<compile_context>
chip_gen: v7x
topology: tpu7x:2x2x1
jax: 0.10.0
libtpu: 0.0.40
codegen_flags: <defaults>
</compile_context>

<pallas_src>
import jax
import jax.numpy as jnp
from jax.experimental import pallas as pl
from jax.experimental.pallas import tpu as pltpu


_VMEM_BUDGET_BYTES = 24 * 1024 * 1024   # conservative per-step budget across v5e/v6e/v7x
_VMEM_LIMIT_BYTES = 48 * 1024 * 1024    # scoped-VMEM limit requested from the compiler
_MAX_TILE_N = 8192


def _pick_tile_n(hw, c_in, c_out, m, in_bytes, out_bytes, batch):
    """Lane-aligned (multiple of 128) spatial tile sized against a VMEM budget."""
    per_lane = (2 * c_in * in_bytes            # double-buffered x tile
                + 2 * 2 * c_out * out_bytes    # double-buffered mean + std tiles
                + (m + 1) * c_out * 4          # fused matmul result (f32)
                + 2 * c_out * 4)               # var / temporaries headroom
    t = min(_MAX_TILE_N, _VMEM_BUDGET_BYTES // per_lane)
    t = max(128, (t // 128) * 128)
    hw_128 = pl.cdiv(hw, 128) * 128
    t = min(t, hw_128)
    # Keep >= ~8 grid steps when possible so both v7x TensorCores stay busy.
    while t > 512 and batch * pl.cdiv(hw_128, t) < 8:
        t = max(128, (t // 2 // 128) * 128)
    return t


def ensemble_forward(x_nchw, weights, biases, out_dtype=None):
    """x_nchw: [B, C_in, H, W]; weights: [M, C_in, C_out]; biases: [M, C_out].

    Returns (mean, std), each [B, C_out, H, W] (NCHW), matching the PyTorch
    module (std is the unbiased / ddof=1 estimate; NaN when M == 1).
    """
    B, C_in, H, W = x_nchw.shape
    M, _, C_out = weights.shape
    HW = H * W
    if out_dtype is None:
        out_dtype = x_nchw.dtype
    in_bytes = x_nchw.dtype.itemsize
    out_bytes = jnp.dtype(out_dtype).itemsize

    tile_n = _pick_tile_n(HW, C_in, C_out, M, in_bytes, out_bytes, B)
    n_tiles = pl.cdiv(HW, tile_n)

    # View input as [B, C_in, H*W] (free reshape, no transpose / extra HBM pass).
    x3d = x_nchw.reshape(B, C_in, HW)

    # Centered-weights formulation (wrapper-side constant folding on tiny tensors):
    #   row block 0     : W_bar = mean_m W_m          -> mean = W_bar @ x + b_bar
    #   row blocks 1..M : D_m = (W_m - W_bar)/sqrt(M-1) -> var = sum_m (D_m @ x + e_m)^2
    w_t = jnp.transpose(weights, (0, 2, 1))             # [M, C_out, C_in]
    w_bar = jnp.mean(w_t, axis=0)                       # [C_out, C_in]
    b_bar = jnp.mean(biases, axis=0)                    # [C_out]
    if M > 1:
        scale = (M - 1) ** -0.5                          # folds ddof=1 into the weights
        d_w = (w_t - w_bar[None]) * scale                # [M, C_out, C_in]
        d_b = (biases - b_bar[None]) * scale             # [M, C_out]
        w_all = jnp.concatenate([w_bar[None], d_w], axis=0)
        b_all = jnp.concatenate([b_bar[None], d_b], axis=0)
    else:
        w_all = w_bar[None]
        b_all = b_bar[None]
    rows = w_all.shape[0] * C_out
    w_all = w_all.reshape(rows, C_in).astype(jnp.float32)
    b_all = b_all.reshape(rows, 1).astype(jnp.float32)

    def kernel(x_ref, w_ref, b_ref, mean_ref, std_ref):
        # x_ref: [1, C_in, tile_n]; w_ref: [rows, C_in]; b_ref: [rows, 1]
        x = x_ref[0]                                     # [C_in, tile_n]
        # Mean + all centered deviations in ONE MXU matmul, f32 accumulation.
        y = jnp.dot(w_ref[...], x, preferred_element_type=jnp.float32)
        y = y + b_ref[...]                               # lane broadcast
        mean_ref[0] = y[:C_out, :].astype(mean_ref.dtype)

        if M > 1:
            dev = y[C_out:, :]                           # [M*C_out, tile_n], pre-centered & scaled
            if C_out % 8 == 0:
                d3 = dev.reshape(M, C_out, dev.shape[-1])
                var = jnp.sum(d3 * d3, axis=0)           # 1/(M-1) already folded in
            else:
                var = jnp.zeros((C_out, dev.shape[-1]), jnp.float32)
                for m in range(M):                       # one [C_out, tile_n] increment at a time
                    dm = dev[m * C_out:(m + 1) * C_out, :]
                    var = var + dm * dm
            std_ref[0] = jnp.sqrt(var).astype(std_ref.dtype)
        else:
            # torch.std (unbiased) of a single sample is NaN.
            std_ref[...] = jnp.full(std_ref.shape, jnp.nan, std_ref.dtype)

    grid_spec = pltpu.PrefetchScalarGridSpec(
        num_scalar_prefetch=0,
        grid=(B, n_tiles),
        in_specs=[
            # x tile: lane-dense over the spatial axis.
            pl.BlockSpec((1, C_in, tile_n), lambda b, n: (b, 0, n)),
            # Tiny weights / biases: full arrays, same block every step (resident).
            pl.BlockSpec((rows, C_in), lambda b, n: (0, 0)),
            pl.BlockSpec((rows, 1), lambda b, n: (0, 0)),
        ],
        out_specs=[
            pl.BlockSpec((1, C_out, tile_n), lambda b, n: (b, 0, n)),
            pl.BlockSpec((1, C_out, tile_n), lambda b, n: (b, 0, n)),
        ],
    )

    flops = 2 * rows * C_in * HW * B
    bytes_accessed = (in_bytes * x3d.size
                      + out_bytes * 2 * B * C_out * HW
                      + 4 * (w_all.size + b_all.size))
    cost = pl.CostEstimate(flops=flops, transcendentals=0,
                           bytes_accessed=bytes_accessed)

    mean3d, std3d = pl.pallas_call(
        kernel,
        out_shape=(
            jax.ShapeDtypeStruct((B, C_out, HW), out_dtype),
            jax.ShapeDtypeStruct((B, C_out, HW), out_dtype),
        ),
        grid_spec=grid_spec,
        compiler_params=pltpu.CompilerParams(
            dimension_semantics=("parallel", "parallel"),
            vmem_limit_bytes=_VMEM_LIMIT_BYTES,
        ),
        cost_estimate=cost,
    )(x3d, w_all, b_all)

    return mean3d.reshape(B, C_out, H, W), std3d.reshape(B, C_out, H, W)


def _reference(x_nchw, weights, biases):
    """Pure-JAX reference mirroring the PyTorch semantics (unbiased std)."""
    outs = jnp.einsum("bchw,mcd->mbdhw", x_nchw, weights)
    outs = outs + biases[:, None, :, None, None]
    mean = jnp.mean(outs, axis=0)
    std = jnp.std(outs, axis=0, ddof=1)
    return mean, std


if __name__ == "__main__":
    # Small deterministic setup: 3 ensemble members, B=2, C_in=4, H=W=16, C_out=8.
    key = jax.random.PRNGKey(0)
    kx, kw, kb = jax.random.split(key, 3)

    B, C_in, H, W = 2, 4, 16, 16
    M, C_out = 3, 8

    x = jax.random.normal(kx, (B, C_in, H, W), dtype=jnp.float32)
    weights = jax.random.normal(kw, (M, C_in, C_out), dtype=jnp.float32) * 0.1
    biases = jax.random.normal(kb, (M, C_out), dtype=jnp.float32) * 0.1

    mean, std = jax.jit(ensemble_forward)(x, weights, biases)
    jax.block_until_ready((mean, std))

    mean_ref, std_ref = _reference(x, weights, biases)
    assert mean.shape == (B, C_out, H, W) and std.shape == (B, C_out, H, W)
    assert jnp.allclose(mean, mean_ref, atol=1e-5, rtol=1e-5)
    assert jnp.allclose(std, std_ref, atol=1e-4, rtol=1e-4)

    print("KERNEL_OK")
</pallas_src>

<mosaic_0001>
module attributes {stable_mosaic.version = 11 : i64} {
  func.func @kernel(%arg0: i32, %arg1: i32, %arg2: memref<1x4x256xf32, #tpu.memory_space<vmem>>, %arg3: memref<32x4xf32, #tpu.memory_space<vmem>>, %arg4: memref<32x1xf32, #tpu.memory_space<vmem>>, %arg5: memref<1x8x256xf32, #tpu.memory_space<vmem>>, %arg6: memref<1x8x256xf32, #tpu.memory_space<vmem>>) attributes {dimension_semantics = [#tpu.dimension_semantics<parallel>, #tpu.dimension_semantics<parallel>], iteration_bounds = array<i64: 2, 1>, scalar_prefetch = 0 : i64, scratch_operands = 0 : i64, tpu.core_type = #tpu.core_type<tc>, window_params = [{transform_indices = @transform_0, window_bounds = array<i64: 1, 4, 256>}, {pipeline_mode = #tpu.pipeline_mode<synchronous>, transform_indices = @transform_1, window_bounds = array<i64: 32, 4>}, {pipeline_mode = #tpu.pipeline_mode<synchronous>, transform_indices = @transform_2, window_bounds = array<i64: 32, 1>}, {transform_indices = @transform_3, window_bounds = array<i64: 1, 8, 256>}, {transform_indices = @transform_4, window_bounds = array<i64: 1, 8, 256>}]} {
    %c0 = arith.constant 0 : index
    %c0_0 = arith.constant 0 : index
    %c0_1 = arith.constant 0 : index
    %0 = vector.load %arg2[%c0, %c0_0, %c0_1] : memref<1x4x256xf32, #tpu.memory_space<vmem>>, vector<1x4x256xf32>
    %1 = vector.shape_cast %0 : vector<1x4x256xf32> to vector<4x256xf32>
    %c0_2 = arith.constant 0 : index
    %c0_3 = arith.constant 0 : index
    %2 = vector.load %arg3[%c0_2, %c0_3] : memref<32x4xf32, #tpu.memory_space<vmem>>, vector<32x4xf32>
    %cst = arith.constant dense<0.000000e+00> : vector<32x256xf32>
    %3 = tpu.matmul %2, %1, %cst {dimension_numbers = #tpu.dot_dimension_numbers<[1], [0], [0], [1], [0, 0, 1, 1], [], []>} : vector<32x4xf32>, vector<4x256xf32>, vector<32x256xf32> -> vector<32x256xf32>
    %c0_4 = arith.constant 0 : index
    %c0_5 = arith.constant 0 : index
    %4 = vector.load %arg4[%c0_4, %c0_5] : memref<32x1xf32, #tpu.memory_space<vmem>>, vector<32x1xf32>
    %5 = vector.broadcast %4 : vector<32x1xf32> to vector<32x256xf32>
    %6 = arith.addf %3, %5 : vector<32x256xf32>
    %7 = vector.extract_strided_slice %6 {offsets = [0, 0], sizes = [8, 256], strides = [1, 1]} : vector<32x256xf32> to vector<8x256xf32>
    %c0_6 = arith.constant 0 : index
    %c0_7 = arith.constant 0 : index
    %c0_8 = arith.constant 0 : index
    %8 = vector.load %arg5[%c0_6, %c0_7, %c0_8] : memref<1x8x256xf32, #tpu.memory_space<vmem>>, vector<1x8x256xf32>
    %9 = vector.shape_cast %8 : vector<1x8x256xf32> to vector<8x256xf32>
    %10 = vector.shape_cast %7 : vector<8x256xf32> to vector<1x8x256xf32>
    tpu.vector_store %arg5[%c0_6, %c0_7, %c0_8], %10 {strides = array<i32>} : memref<1x8x256xf32, #tpu.memory_space<vmem>>, vector<1x8x256xf32>,
    %11 = vector.extract_strided_slice %6 {offsets = [8, 0], sizes = [24, 256], strides = [1, 1]} : vector<32x256xf32> to vector<24x256xf32>
    %12 = vector.shape_cast %11 : vector<24x256xf32> to vector<3x8x256xf32>
    %13 = arith.mulf %12, %12 : vector<3x8x256xf32>
    %cst_9 = arith.constant dense<0.000000e+00> : vector<8x256xf32>
    %14 = vector.multi_reduction <add>, %13, %cst_9 [0] : vector<3x8x256xf32> to vector<8x256xf32>
    %15 = math.sqrt %14 : vector<8x256xf32>
    %c0_10 = arith.constant 0 : index
    %c0_11 = arith.constant 0 : index
    %c0_12 = arith.constant 0 : index
    %16 = vector.load %arg6[%c0_10, %c0_11, %c0_12] : memref<1x8x256xf32, #tpu.memory_space<vmem>>, vector<1x8x256xf32>
    %17 = vector.shape_cast %16 : vector<1x8x256xf32> to vector<8x256xf32>
    %18 = vector.shape_cast %15 : vector<8x256xf32> to vector<1x8x256xf32>
    tpu.vector_store %arg6[%c0_10, %c0_11, %c0_12], %18 {strides = array<i32>} : memref<1x8x256xf32, #tpu.memory_space<vmem>>, vector<1x8x256xf32>,
    return
  }
  func.func @transform_0(%arg0: i32, %arg1: i32) -> (i32, i32, i32) {
    %c0_i32 = arith.constant 0 : i32
    %c0_i32_0 = arith.constant 0 : i32
    return %arg0, %c0_i32, %arg1 : i32, i32, i32
  }
  func.func @transform_1(%arg0: i32, %arg1: i32) -> (i32, i32) {
    %c0_i32 = arith.constant 0 : i32
    %c0_i32_0 = arith.constant 0 : i32
    %c0_i32_1 = arith.constant 0 : i32
    return %c0_i32, %c0_i32_0 : i32, i32
  }
  func.func @transform_2(%arg0: i32, %arg1: i32) -> (i32, i32) {
    %c0_i32 = arith.constant 0 : i32
    %c0_i32_0 = arith.constant 0 : i32
    %c0_i32_1 = arith.constant 0 : i32
    return %c0_i32, %c0_i32_0 : i32, i32
  }
  func.func @transform_3(%arg0: i32, %arg1: i32) -> (i32, i32, i32) {
    %c0_i32 = arith.constant 0 : i32
    %c0_i32_0 = arith.constant 0 : i32
    return %arg0, %c0_i32, %arg1 : i32, i32, i32
  }
  func.func @transform_4(%arg0: i32, %arg1: i32) -> (i32, i32, i32) {
    %c0_i32 = arith.constant 0 : i32
    %c0_i32_0 = arith.constant 0 : i32
    return %arg0, %c0_i32, %arg1 : i32, i32, i32
  }
}

</mosaic_0001>

<llo_original>
// kernel: ensemble_forward.1
$region0: #{ensemble_forward.1}
  #allocation0 [shape = 'u32[]', space=smem, size = 0x4, offset = 0x4, fixed_abs, tag = 'smem constant byte address 0x4 - core index']
  #allocation1 [shape = 'u32[144,128]{1,0:T(1,128)}', space=vmem, size = 0x12000, scoped, tag = 'internal scratch']
  %s0 = inlined_call_operand.vmem [shape: f32[2,4,256], index: 0, kind: input, shape index: {}]
  %s1 = inlined_call_operand.vmem [shape: f32[32,4], index: 1, kind: input, shape index: {}]
  %s2 = inlined_call_operand.vmem [shape: f32[32,1], index: 2, kind: input, shape index: {}]
  %s3 = inlined_call_operand.vmem [shape: f32[2,8,256], index: 3, kind: output, shape index: {0}]
  %s4 = inlined_call_operand.vmem [shape: f32[2,8,256], index: 4, kind: output, shape index: {1}]
  %5 = xla_tuple %s3, %s4
  %s6 = sld [smem:[#allocation0]]
  $region53: #{ensemble_forward.1} parent=0
    _
  %s8 = ssub.s32 1, %s6
  %s9 = scalar_select 0, %s8, %s6
  loop: start=0, step=1, limit=4
  $region2: #{ensemble_forward.1} parent=0 // loop_pre_header
    _
  $region3: #{ensemble_forward.1} parent=0 // loop_header
    %s11 = sphi 0, %s15
    %p12 = scmp.ge.s32.totalorder %s11, 4
    %s18 = sphi 0, %s30
    %s19 = sphi 0, %s26
    %s20 = sphi 0, %s18
    %s21 = sphi 0, %s19
    %s22 = sphi 0, %s20
    %s23 = sphi 0, %s21
    %s35 = sphi 0, %s37
    %s38 = sphi 0, %s35
    %s39 = sphi 0, %s38
    %s55 = sphi 0, %s39
    %s59 = sphi 0, %s59
    %s61 = sphi 0, %s59
    %s62 = sphi 0, %s61
    %s76 = sphi 0, %s62
    %s80 = sphi 0, %s80
    %s82 = sphi 0, %s80
    %s83 = sphi 0, %s82
    %s97 = sphi 0, %s83
    %s105 = sphi 0, %s107
    %s108 = sphi 0, %s105
    %s109 = sphi 0, %s108
    %s125 = sphi 0, %s109
    %s133 = sphi 0, %s135
    %s136 = sphi 0, %s133
    %s137 = sphi 0, %s136
    %s153 = sphi 0, %s137
  $region4: #{ensemble_forward.1} parent=0 // loop_header_branch
    %14 = sbr.rel (%p12) target = $region8
  $region5: #{ensemble_forward.1} parent=0 // loop_body
    %s16 = ssub.s32 %s11, 1
    %s17 = ssub.s32 %s11, 2
    %s24 = sadd.s32 1, %s19
    %p25 = scmp.ge.s32.totalorder %s24, 1
    %s26 = scalar_select %p25, 0, %s24
    %s27 = sadd.s32 1, %s18
    %s28 = scalar_select %p25, %s27, %s18
    %p29 = scmp.ge.s32.totalorder %s28, 2
    %s30 = scalar_select %p29, 0, %s28
    %s31 = ssub.s32 %s18, %s30
    %s32 = ssub.s32 %s19, %s26
    %s33 = sor.u32 %s31, %s32
    %p34 = scmp.eq.s32.totalorder %s33, 0
    %s36 = sadd.s32 %s35, 1
    %s37 = scalar_select %p34, %s35, %s36
    %p40 = pneg %p34
    %p41 = scmp.eq.s32.totalorder %s11, 1
    %p42 = por %p40, %p41
    %p43 = scmp.ne.s32.totalorder %s35, %s38
    %p44 = scmp.eq.s32.totalorder %s11, 0
    %p45 = por %p43, %p44
    %p46 = scmp.ne.s32.totalorder %s35, %s38
    %p47 = scmp.eq.s32.totalorder %s16, 1
    %p48 = por %p46, %p47
    %p49 = scmp.ne.s32.totalorder %s38, %s39
    %p50 = scmp.eq.s32.totalorder %s16, 0
    %p51 = por %p49, %p50
    %p52 = scmp.ne.s32.totalorder %s38, %s39
    %p53 = scmp.eq.s32.totalorder %s17, 1
    %p54 = por %p52, %p53
    %p56 = scmp.ne.s32.totalorder %s39, %s55
    %p57 = scmp.eq.s32.totalorder %s17, 0
    %p58 = por %p56, %p57
    %s60 = sadd.s32 %s59, 1
    %p63 = scmp.eq.s32.totalorder %s11, 1
    %p64 = scmp.ne.s32.totalorder %s59, %s61
    %p65 = scmp.eq.s32.totalorder %s11, 0
    %p66 = por %p64, %p65
    %p67 = scmp.ne.s32.totalorder %s59, %s61
    %p68 = scmp.eq.s32.totalorder %s16, 1
    %p69 = por %p67, %p68
    %p70 = scmp.ne.s32.totalorder %s61, %s62
    %p71 = scmp.eq.s32.totalorder %s16, 0
    %p72 = por %p70, %p71
    %p73 = scmp.ne.s32.totalorder %s61, %s62
    %p74 = scmp.eq.s32.totalorder %s17, 1
    %p75 = por %p73, %p74
    %p77 = scmp.ne.s32.totalorder %s62, %s76
    %p78 = scmp.eq.s32.totalorder %s17, 0
    %p79 = por %p77, %p78
    %s81 = sadd.s32 %s80, 1
    %p84 = scmp.eq.s32.totalorder %s11, 1
    %p85 = scmp.ne.s32.totalorder %s80, %s82
    %p86 = scmp.eq.s32.totalorder %s11, 0
    %p87 = por %p85, %p86
    %p88 = scmp.ne.s32.totalorder %s80, %s82
    %p89 = scmp.eq.s32.totalorder %s16, 1
    %p90 = por %p88, %p89
    %p91 = scmp.ne.s32.totalorder %s82, %s83
    %p92 = scmp.eq.s32.totalorder %s16, 0
    %p93 = por %p91, %p92
    %p94 = scmp.ne.s32.totalorder %s82, %s83
    %p95 = scmp.eq.s32.totalorder %s17, 1
    %p96 = por %p94, %p95
    %p98 = scmp.ne.s32.totalorder %s83, %s97
    %p99 = scmp.eq.s32.totalorder %s17, 0
    %p100 = por %p98, %p99
    %s101 = ssub.s32 %s18, %s30
    %s102 = ssub.s32 %s19, %s26
    %s103 = sor.u32 %s101, %s102
    %p104 = scmp.eq.s32.totalorder %s103, 0
    %s106 = sadd.s32 %s105, 1
    %s107 = scalar_select %p104, %s105, %s106
    %p110 = pneg %p104
    %p111 = scmp.eq.s32.totalorder %s11, 1
    %p112 = por %p110, %p111
    %p113 = scmp.ne.s32.totalorder %s105, %s108
    %p114 = scmp.eq.s32.totalorder %s11, 0
    %p115 = por %p113, %p114
    %p116 = scmp.ne.s32.totalorder %s105, %s108
    %p117 = scmp.eq.s32.totalorder %s16, 1
    %p118 = por %p116, %p117
    %p119 = scmp.ne.s32.totalorder %s108, %s109
    %p120 = scmp.eq.s32.totalorder %s16, 0
    %p121 = por %p119, %p120
    %p122 = scmp.ne.s32.totalorder %s108, %s109
    %p123 = scmp.eq.s32.totalorder %s17, 1
    %p124 = por %p122, %p123
    %p126 = scmp.ne.s32.totalorder %s109, %s125
    %p127 = scmp.eq.s32.totalorder %s17, 0
    %p128 = por %p126, %p127
    %s129 = ssub.s32 %s18, %s30
    %s130 = ssub.s32 %s19, %s26
    %s131 = sor.u32 %s129, %s130
    %p132 = scmp.eq.s32.totalorder %s131, 0
    %s134 = sadd.s32 %s133, 1
    %s135 = scalar_select %p132, %s133, %s134
    %p138 = pneg %p132
    %p139 = scmp.eq.s32.totalorder %s11, 1
    %p140 = por %p138, %p139
    %p141 = scmp.ne.s32.totalorder %s133, %s136
    %p142 = scmp.eq.s32.totalorder %s11, 0
    %p143 = por %p141, %p142
    %p144 = scmp.ne.s32.totalorder %s133, %s136
    %p145 = scmp.eq.s32.totalorder %s16, 1
    %p146 = por %p144, %p145
    %p147 = scmp.ne.s32.totalorder %s136, %s137
    %p148 = scmp.eq.s32.totalorder %s16, 0
    %p149 = por %p147, %p148
    %p150 = scmp.ne.s32.totalorder %s136, %s137
    %p151 = scmp.eq.s32.totalorder %s17, 1
    %p152 = por %p150, %p151
    %p154 = scmp.ne.s32.totalorder %s137, %s153
    %p155 = scmp.eq.s32.totalorder %s17, 0
    %p156 = por %p154, %p155
    %p157 = scmp.le.s32.totalorder 1, %s11
    %p158 = scmp.lt.s32.totalorder %s11, 3
    %p159 = pnand %p157, %p158
    %p160 = pneg %p159
    // Predicated region
    $region9: #{ensemble_forward.1} parent=5 // pred_check
      _
    $region10: #{ensemble_forward.1} parent=5 // pred_check_branch
      %162 = sbr.rel (%p159) target = $region12
    $region11: #{ensemble_forward.1} parent=5 // pred_region
      %s163 = ssub.s32 %s11, 1
      // Predicated region
      $region13: #{ensemble_forward.1} parent=11 // pred_check
        %p164 = pneg %p72
      $region14: #{ensemble_forward.1} parent=11 // pred_check_branch
        %166 = sbr.rel (%p164) target = $region16
      $region15: #{ensemble_forward.1} parent=11 // pred_region
        _
      $region16: #{ensemble_forward.1} parent=11 // pred_fallthru
        _
      // Predicated region
      $region17: #{ensemble_forward.1} parent=11 // pred_check
        %p167 = pneg %p93
      $region18: #{ensemble_forward.1} parent=11 // pred_check_branch
        %169 = sbr.rel (%p167) target = $region20
      $region19: #{ensemble_forward.1} parent=11 // pred_region
        _
      $region20: #{ensemble_forward.1} parent=11 // pred_fallthru
        _
    $region12: #{ensemble_forward.1} parent=5 // pred_fallthru
      _
    %p170 = scmp.lt.s32.totalorder %s11, 2
    // Predicated region
    $region21: #{ensemble_forward.1} parent=5 // pred_check
      %p171 = pneg %p170
    $region22: #{ensemble_forward.1} parent=5 // pred_check_branch
      %173 = sbr.rel (%p171) target = $region24
    $region23: #{ensemble_forward.1} parent=5 // pred_region
      // Predicated region
      $region25: #{ensemble_forward.1} parent=23 // pred_check
        %p174 = pneg %p45
      $region26: #{ensemble_forward.1} parent=23 // pred_check_branch
        %176 = sbr.rel (%p174) target = $region28
      $region27: #{ensemble_forward.1} parent=23 // pred_region
        %s177 = smul.u32 2, %s19
        %p178 = scmp.lt.s32.totalorder %s18, 1
        %s179 = scalar_select %p178, %s18, 1
        %p180 = scmp.lt.s32.totalorder %s177, 1
        %s181 = scalar_select %p180, %s177, 1
        %s182 = smul.addr %s179, 2
        %s183 = sadd.s32 %s181, %s182
        %s184 = smul.addr %s183, 4
        %s185 = scalar_lea.vmem %s0, %s184
        %s186 = smul.u32 2, %s19
      $region28: #{ensemble_forward.1} parent=23 // pred_fallthru
        _
    $region24: #{ensemble_forward.1} parent=5 // pred_fallthru
      _
    %p187 = scmp.le.s32.totalorder 1, %s11
    %p188 = scmp.lt.s32.totalorder %s11, 3
    %p189 = pnand %p187, %p188
    %p190 = pneg %p189
    // Predicated region
    $region29: #{ensemble_forward.1} parent=5 // pred_check
      _
    $region30: #{ensemble_forward.1} parent=5 // pred_check_branch
      %192 = sbr.rel (%p189) target = $region32
    $region31: #{ensemble_forward.1} parent=5 // pred_region
      %s193 = ssub.s32 %s11, 1
      %s194 = smul.u32 2, %s21
      %p195 = scmp.lt.s32.totalorder %s20, 1
      %s196 = scalar_select %p195, %s20, 1
      %p197 = scmp.lt.s32.totalorder %s194, 1
      %s198 = scalar_select %p197, %s194, 1
      %s199 = smul.addr %s196, 2
      %s200 = sadd.s32 %s198, %s199
      %s201 = smul.addr %s200, 4
      %s202 = scalar_lea.vmem %s0, %s201
      %p203 = pneg %p51
      %p204 = pneg %p48
      %p205 = pneg %p72
      %p206 = pneg %p69
      %p207 = pneg %p93
      %p208 = pneg %p90
      %p209 = pneg %p121
      %p210 = pneg %p118
      %s211 = smul.u32 2, %s21
      %p212 = scmp.lt.s32.totalorder %s20, 1
      %s213 = scalar_select %p212, %s20, 1
      %p214 = scmp.lt.s32.totalorder %s211, 1
      %s215 = scalar_select %p214, %s211, 1
      %s216 = smul.addr %s213, 2
      %s217 = sadd.s32 %s215, %s216
      %s218 = smul.addr %s217, 8
      %s219 = scalar_lea.vmem %s3, %s218
      %p220 = pneg %p149
      %p221 = pneg %p146
      %s222 = smul.u32 2, %s21
      %p223 = scmp.lt.s32.totalorder %s20, 1
      %s224 = scalar_select %p223, %s20, 1
      %p225 = scmp.lt.s32.totalorder %s222, 1
      %s226 = scalar_select %p225, %s222, 1
      %s227 = smul.addr %s224, 2
      %s228 = sadd.s32 %s226, %s227
      %s229 = smul.addr %s228, 8
      %s230 = scalar_lea.vmem %s4, %s229
      %s231 = smul.u32 2, %s21
      %p232 = scmp.lt.s32.totalorder %s20, 1
      %s233 = scalar_select %p232, %s20, 1
      %p234 = scmp.lt.s32.totalorder %s231, 1
      %s235 = scalar_select %p234, %s231, 1
      %s236 = smul.addr %s233, 2
      %s237 = sadd.s32 %s235, %s236
      %s238 = smul.addr %s237, 4
      %s239 = scalar_lea.vmem %s0, %s238
      %s240 = smul.u32 2, %s21
      %s241 = smul.u32 2, %s21
      %p242 = scmp.lt.s32.totalorder %s20, 1
      %s243 = scalar_select %p242, %s20, 1
      %p244 = scmp.lt.s32.totalorder %s241, 1
      %s245 = scalar_select %p244, %s241, 1
      %s246 = smul.addr %s243, 2
      %s247 = sadd.s32 %s245, %s246
      %s248 = smul.addr %s247, 8
      %s249 = scalar_lea.vmem %s3, %s248
      %s250 = smul.u32 2, %s21
      %s251 = smul.u32 2, %s21
      %p252 = scmp.lt.s32.totalorder %s20, 1
      %s253 = scalar_select %p252, %s20, 1
      %p254 = scmp.lt.s32.totalorder %s251, 1
      %s255 = scalar_select %p254, %s251, 1
      %s256 = smul.addr %s253, 2
      %s257 = sadd.s32 %s255, %s256
      %s258 = smul.addr %s257, 8
      %s259 = scalar_lea.vmem %s4, %s258
      %s260 = smul.u32 2, %s21
      %v261 = vld [vmem:[%s239] sm:$0xff]
      %v262 = vld [vmem:[%s1] sm:$0xff]
      %v263 = vld [vmem:[%s1 + $0x8] sm:$0xff]
      %v264 = vld [vmem:[%s1 + $0x10] sm:$0xff]
      %v265 = vld [vmem:[%s1 + $0x18] sm:$0xff]
      %v266 = vld [vmem:[%s2] sm:$0xff]
      %v267 = vld [vmem:[%s2 + $0x8] sm:$0xff]
      %v268 = vld [vmem:[%s2 + $0x10] sm:$0xff]
      %v269 = vld [vmem:[%s2 + $0x18] sm:$0xff]
      %271 = vset.pattern.permute.xlu0 0
      %272 = vperm.xlu0 %271, %v266
      %v273 = vpop.permute.xlu0 %272
      %276 = vset.pattern.permute.xlu0 0
      %277 = vperm.xlu0 %276, %v267
      %v278 = vpop.permute.xlu0 %277
      %281 = vset.pattern.permute.xlu0 0
      %282 = vperm.xlu0 %281, %v268
      %v283 = vpop.permute.xlu0 %282
      %286 = vset.pattern.permute.xlu0 0
      %287 = vperm.xlu0 %286, %v269
      %v288 = vpop.permute.xlu0 %287
      %v291 = vcombine.high %v261, %v261
      %vm292 = vcmask 31744
      %v294 = vsel %vm292, %v262, 0
      %v297 = vsel %vm292, %v263, 0
      %v300 = vsel %vm292, %v264, 0
      %v303 = vsel %vm292, %v265, 0
      %vm305 = vcmask 1043456
      %v306 = vsel %vm305, %v261, 0
      %v308 = vsel %vm305, %v291, 0
      %310 = vmatprep.subr.mxu0 %v308
      %311 = vmatpush1.msra.mxu0 %v306
      %312 = vmatprep.subr.mxu0 0.0
      %313 = vmatpush1.msra.mxu0 0.0
      %314 = vmatprep.subr.mxu0 0.0
      %315 = vmatpush1.msra.mxu0 0.0
      %316 = vmatprep.subr.mxu0 0.0
      %317 = vmatpush1.msra.mxu0 0.0
      %318 = vmatprep.subr.mxu0 0.0
      %319 = vmatpush1.msra.mxu0 0.0
      %320 = vmatprep.subr.mxu0 0.0
      %321 = vmatpush1.msra.mxu0 0.0
      %322 = vmatprep.subr.mxu0 0.0
      %323 = vmatpush1.msra.mxu0 0.0
      %324 = vmatprep.subr.mxu0 0.0
      %325 = vmatpush1.msra.mxu0 0.0
      %326 = vmatprep.subr.mxu0 0.0
      %327 = vmatpush1.msra.mxu0 0.0
      %328 = vmatprep.subr.mxu0 0.0
      %329 = vmatpush1.msra.mxu0 0.0
      %330 = vmatprep.subr.mxu0 0.0
      %331 = vmatpush1.msra.mxu0 0.0
      %332 = vmatprep.subr.mxu0 0.0
      %333 = vmatpush1.msra.mxu0 0.0
      %334 = vmatprep.subr.mxu0 0.0
      %335 = vmatpush1.msra.mxu0 0.0
      %336 = vmatprep.subr.mxu0 0.0
      %337 = vmatpush1.msra.mxu0 0.0
      %338 = vmatprep.subr.mxu0 0.0
      %339 = vmatpush1.msra.mxu0 0.0
      %340 = vmatprep.subr.mxu0 0.0
      %341 = vmatpush1.msra.mxu0 0.0
      %342 = vmatprep.subr.mxu0 0.0
      %343 = vmatpush1.msra.mxu0 0.0
      %344 = vmatprep.subr.mxu0 0.0
      %345 = vmatpush1.msra.mxu0 0.0
      %346 = vmatprep.subr.mxu0 0.0
      %347 = vmatpush1.msra.mxu0 0.0
      %348 = vmatprep.subr.mxu0 0.0
      %349 = vmatpush1.msra.mxu0 0.0
      %350 = vmatprep.subr.mxu0 0.0
      %351 = vmatpush1.msra.mxu0 0.0
      %352 = vmatprep.subr.mxu0 0.0
      %353 = vmatpush1.msra.mxu0 0.0
      %354 = vmatprep.subr.mxu0 0.0
      %355 = vmatpush1.msra.mxu0 0.0
      %356 = vmatprep.subr.mxu0 0.0
      %357 = vmatpush1.msra.mxu0 0.0
      %358 = vmatprep.subr.mxu0 0.0
      %359 = vmatpush1.msra.mxu0 0.0
      %360 = vmatprep.subr.mxu0 0.0
      %361 = vmatpush1.msra.mxu0 0.0
      %362 = vmatprep.subr.mxu0 0.0
      %363 = vmatpush1.msra.mxu0 0.0
      %364 = vmatprep.subr.mxu0 0.0
      %365 = vmatpush1.msra.mxu0 0.0
      %366 = vmatprep.subr.mxu0 0.0
      %367 = vmatpush1.msra.mxu0 0.0
      %368 = vmatprep.subr.mxu0 0.0
      %369 = vmatpush1.msra.mxu0 0.0
      %370 = vmatprep.subr.mxu0 0.0
      %371 = vmatpush1.msra.mxu0 0.0
      %372 = vmatprep.subr.mxu0 0.0
      %373 = vmatpush1.msra.mxu0 0.0
      %374 = vmatprep.mubr.f32.mxu0 0.0
      %375 = vmatmul.mubr.f32.gmra.mrb[0].mxu0 %v294
      %v376 = vpop.f32.mrb[0].mxu0
      %v377 = vadd.f32 %v273, %v376
      %v378 = vpop.f32.mrb[0].mxu0
      %v379 = vadd.f32 %v273, %v378
      %380 = vmatprep.mubr.f32.mxu0 0.0
      %381 = vmatmul.mubr.f32.gmra.mrb[0].mxu0 %v297
      %v382 = vpop.f32.mrb[0].mxu0
      %v383 = vadd.f32 %v278, %v382
      %v384 = vpop.f32.mrb[0].mxu0
      %v385 = vadd.f32 %v278, %v384
      %386 = vmatprep.mubr.f32.mxu0 0.0
      %387 = vmatmul.mubr.f32.gmra.mrb[0].mxu0 %v300
      %v388 = vpop.f32.mrb[0].mxu0
      %v389 = vadd.f32 %v283, %v388
      %v390 = vpop.f32.mrb[0].mxu0
      %v391 = vadd.f32 %v283, %v390
      %392 = vmatprep.mubr.f32.mxu0 0.0
      %393 = vmatmul.mubr.f32.gmra.mrb[0].mxu0 %v303
      %v394 = vpop.f32.mrb[0].mxu0
      %v395 = vadd.f32 %v288, %v394
      %v396 = vpop.f32.mrb[0].mxu0
      %v397 = vadd.f32 %v288, %v396
      %398 = vdwg.mxu0
      %399 = vst [vmem:[%s249] sm:$0xff] %v377
      %400 = vst [vmem:[%s249 + $0x8] sm:$0xff] %v379
      %v401 = vmul.f32 %v383, %v383
      %v402 = vmul.f32 %v385, %v385
      %v403 = vmul.f32 %v389, %v389
      %v404 = vmul.f32 %v391, %v391
      %v405 = vmul.f32 %v395, %v395
      %v406 = vmul.f32 %v397, %v397
      %v407 = vadd.f32 %v401, %v403
      %v408 = vadd.f32 %v407, %v405
      %v409 = vadd.f32 %v402, %v404
      %v410 = vadd.f32 %v409, %v406
      %v411 = vrsqrt.pop %v408
      %v412 = vmul.f32 %v408, %v411
      %vm413 = vcmp.eq.f32.partialorder %v408, inf
      %v414 = vsel %vm413, %v408, %v412
      %vm415 = vcmp.eq.f32.partialorder %v408, 0.0
      %v416 = vand.u32 %v408, 2147483648
      %v417 = vsel %vm415, %v416, %v414
      %v418 = vrsqrt.pop %v410
      %v419 = vmul.f32 %v410, %v418
      %vm420 = vcmp.eq.f32.partialorder %v410, inf
      %v421 = vsel %vm420, %v410, %v419
      %vm422 = vcmp.eq.f32.partialorder %v410, 0.0
      %v423 = vand.u32 %v410, 2147483648
      %v424 = vsel %vm422, %v423, %v421
      %425 = vst [vmem:[%s259] sm:$0xff] %v417
      %426 = vst [vmem:[%s259 + $0x8] sm:$0xff] %v424
      %s427 = smul.u32 2, %s21
      %p428 = scmp.lt.s32.totalorder %s20, 1
      %s429 = scalar_select %p428, %s20, 1
      %p430 = scmp.lt.s32.totalorder %s427, 1
      %s431 = scalar_select %p430, %s427, 1
      %s432 = smul.addr %s429, 2
      %s433 = sadd.s32 %s431, %s432
      %s434 = smul.addr %s433, 8
      %s435 = scalar_lea.vmem %s3, %s434
      %s436 = smul.u32 2, %s21
      %p437 = scmp.lt.s32.totalorder %s20, 1
      %s438 = scalar_select %p437, %s20, 1
      %p439 = scmp.lt.s32.totalorder %s436, 1
      %s440 = scalar_select %p439, %s436, 1
      %s441 = smul.addr %s438, 2
      %s442 = sadd.s32 %s440, %s441
      %s443 = smul.addr %s442, 8
      %s444 = scalar_lea.vmem %s4, %s443
      // Predicated region
      $region33: #{ensemble_forward.1} parent=31 // pred_check
        %p445 = pneg %p118
      $region34: #{ensemble_forward.1} parent=31 // pred_check_branch
        %447 = sbr.rel (%p445) target = $region36
      $region35: #{ensemble_forward.1} parent=31 // pred_region
        %s448 = smul.u32 2, %s21
      $region36: #{ensemble_forward.1} parent=31 // pred_fallthru
        _
      // Predicated region
      $region37: #{ensemble_forward.1} parent=31 // pred_check
        %p449 = pneg %p146
      $region38: #{ensemble_forward.1} parent=31 // pred_check_branch
        %451 = sbr.rel (%p449) target = $region40
      $region39: #{ensemble_forward.1} parent=31 // pred_region
        %s452 = smul.u32 2, %s21
      $region40: #{ensemble_forward.1} parent=31 // pred_fallthru
        _
    $region32: #{ensemble_forward.1} parent=5 // pred_fallthru
      _
    %p453 = scmp.le.s32.totalorder 2, %s11
    // Predicated region
    $region41: #{ensemble_forward.1} parent=5 // pred_check
      %p454 = pneg %p453
    $region42: #{ensemble_forward.1} parent=5 // pred_check_branch
      %456 = sbr.rel (%p454) target = $region44
    $region43: #{ensemble_forward.1} parent=5 // pred_region
      %s457 = ssub.s32 %s11, 2
      // Predicated region
      $region45: #{ensemble_forward.1} parent=43 // pred_check
        %p458 = pneg %p124
      $region46: #{ensemble_forward.1} parent=43 // pred_check_branch
        %460 = sbr.rel (%p458) target = $region48
      $region47: #{ensemble_forward.1} parent=43 // pred_region
        %s461 = smul.u32 2, %s23
        %p462 = scmp.lt.s32.totalorder %s22, 1
        %s463 = scalar_select %p462, %s22, 1
        %p464 = scmp.lt.s32.totalorder %s461, 1
        %s465 = scalar_select %p464, %s461, 1
        %s466 = smul.addr %s463, 2
        %s467 = sadd.s32 %s465, %s466
        %s468 = smul.addr %s467, 8
        %s469 = scalar_lea.vmem %s3, %s468
      $region48: #{ensemble_forward.1} parent=43 // pred_fallthru
        _
      // Predicated region
      $region49: #{ensemble_forward.1} parent=43 // pred_check
        %p470 = pneg %p152
      $region50: #{ensemble_forward.1} parent=43 // pred_check_branch
        %472 = sbr.rel (%p470) target = $region52
      $region51: #{ensemble_forward.1} parent=43 // pred_region
        %s473 = smul.u32 2, %s23
        %p474 = scmp.lt.s32.totalorder %s22, 1
        %s475 = scalar_select %p474, %s22, 1
        %p476 = scmp.lt.s32.totalorder %s473, 1
        %s477 = scalar_select %p476, %s473, 1
        %s478 = smul.addr %s475, 2
        %s479 = sadd.s32 %s477, %s478
        %s480 = smul.addr %s479, 8
        %s481 = scalar_lea.vmem %s4, %s480
      $region52: #{ensemble_forward.1} parent=43 // pred_fallthru
        _
    $region44: #{ensemble_forward.1} parent=5 // pred_fallthru
      _
  $region6: #{ensemble_forward.1} parent=0 // loop_footer
    %s15 = sadd.s32 1, %s11
  $region7: #{ensemble_forward.1} parent=0 // loop_footer_branch
    %10 = sbr.rel target = $region3
  $region8: #{ensemble_forward.1} parent=0 // loop_exit
    _

</llo_original>
